<compile_context>
chip_gen: v6e
topology: v6e:2x2x1
jax: 0.10.0
libtpu: 0.0.40
codegen_flags: <defaults>
</compile_context>

<pallas_src>
import functools
import math

import jax
import jax.numpy as jnp
from jax.experimental import pallas as pl
from jax.experimental.pallas import tpu as pltpu


def _round_up(x, m):
    return ((x + m - 1) // m) * m


def _cpad(c):
    return _round_up(c, 128)


# --------------------------------------------------------------------------
# Pallas kernel: branch-batched GEMM + fused BN affine (+residual) (+ReLU)
# --------------------------------------------------------------------------

def _gemm_kernel(a_ref, b_ref, s_ref, t_ref, o_ref, *, relu):
    acc = jnp.dot(a_ref[...], b_ref[...], preferred_element_type=jnp.float32)
    y = acc * s_ref[...] + t_ref[...]
    if relu:
        y = jnp.maximum(y, 0.0)
    o_ref[...] = y.astype(o_ref.dtype)


def _gemm_res_kernel(a_ref, b_ref, s_ref, t_ref, r_ref, o_ref, *, relu):
    acc = jnp.dot(a_ref[...], b_ref[...], preferred_element_type=jnp.float32)
    y = acc * s_ref[...] + t_ref[...] + r_ref[...].astype(jnp.float32)
    if relu:
        y = jnp.maximum(y, 0.0)
    o_ref[...] = y.astype(o_ref.dtype)


def _pick_tiles(M, K, N):
    """Largest lane-dense N tile whose double-buffered weight slab stays small."""
    tm = min(256, _round_up(M, 8))
    tn = 128
    # single weight tile (K, tn) in bf16 capped at 4 MiB (8 MiB double-buffered)
    while tn * 2 <= min(N, 2048) and K * (tn * 2) * 2 <= (4 << 20):
        tn *= 2
    return tm, tn


def batched_matmul_affine(a, b, scale, bias, *, residual=None, relu=True,
                          out_dtype=jnp.bfloat16):
    """Per-branch: relu((a @ b) * scale + bias [+ residual]).

    a: (B, M, K) bf16,  b: (B, K, N) bf16 (pre-laid-out, K,N padded),
    scale/bias: (B, 1, N) f32, residual: (B, M, N) or None.
    Single full-K tile (no K grid axis); grid = (branch, M tiles, N tiles).
    """
    B, M, K = a.shape
    _, K2, N = b.shape
    assert K == K2 and N % 128 == 0 and K % 128 == 0

    tm, tn = _pick_tiles(M, K, N)
    Mp = _round_up(M, tm)

    if Mp != M:
        a = jnp.pad(a, ((0, 0), (0, Mp - M), (0, 0)))
        if residual is not None:
            residual = jnp.pad(residual, ((0, 0), (0, Mp - M), (0, 0)))

    grid = (B, Mp // tm, N // tn)
    in_specs = [
        pl.BlockSpec((None, tm, K), lambda bb, i, j: (bb, i, 0)),
        pl.BlockSpec((None, K, tn), lambda bb, i, j: (bb, 0, j)),
        pl.BlockSpec((None, 1, tn), lambda bb, i, j: (bb, 0, j)),
        pl.BlockSpec((None, 1, tn), lambda bb, i, j: (bb, 0, j)),
    ]
    args = [a, b, scale, bias]
    if residual is None:
        kernel = functools.partial(_gemm_kernel, relu=relu)
    else:
        kernel = functools.partial(_gemm_res_kernel, relu=relu)
        in_specs.append(pl.BlockSpec((None, tm, tn), lambda bb, i, j: (bb, i, j)))
        args.append(residual)

    out = pl.pallas_call(
        kernel,
        out_shape=jax.ShapeDtypeStruct((B, Mp, N), out_dtype),
        grid_spec=pltpu.PrefetchScalarGridSpec(
            num_scalar_prefetch=0,
            grid=grid,
            in_specs=in_specs,
            out_specs=pl.BlockSpec((None, tm, tn), lambda bb, i, j: (bb, i, j)),
        ),
        compiler_params=pltpu.CompilerParams(
            dimension_semantics=("parallel", "parallel", "parallel"),
            vmem_limit_bytes=32 * 1024 * 1024),
    )(*args)
    if Mp != M:
        out = out[:, :M]
    return out


# --------------------------------------------------------------------------
# Conv glue (im2col in XLA, GEMM in Pallas), maxpool
# --------------------------------------------------------------------------

def im2col(x, kh, kw, stride, pad):
    """x: (B, N, H, W, C) -> (B, N*OH*OW, kh*kw*C), plus OH, OW."""
    B, N, H, W, C = x.shape
    xp = jnp.pad(x, ((0, 0), (0, 0), (pad, pad), (pad, pad), (0, 0)))
    OH = (H + 2 * pad - kh) // stride + 1
    OW = (W + 2 * pad - kw) // stride + 1
    cols = []
    for i in range(kh):
        for j in range(kw):
            cols.append(xp[:, :, i:i + stride * OH:stride,
                           j:j + stride * OW:stride, :])
    patches = jnp.stack(cols, axis=4)            # (B, N, OH, OW, kh*kw, C)
    return patches.reshape(B, N * OH * OW, kh * kw * C), OH, OW


def conv_bn(x, p, k, stride, pad, *, relu=True, residual=None,
            out_dtype=jnp.bfloat16):
    """Conv2d (no bias) + folded BN affine (+residual) (+ReLU), both branches."""
    B, N, H, W, C = x.shape
    if k == 1 and stride == 1 and pad == 0:
        a, OH, OW = x.reshape(B, N * H * W, C), H, W
    else:
        a, OH, OW = im2col(x, k, k, stride, pad)
    Kp = p['w'].shape[1]
    if a.shape[-1] != Kp:                        # stem only (Cin=3): pad K tail
        a = jnp.pad(a, ((0, 0), (0, 0), (0, Kp - a.shape[-1])))
    res = None if residual is None else residual.reshape(B, N * OH * OW, -1)
    y = batched_matmul_affine(a, p['w'], p['scale'], p['bias'],
                              residual=res, relu=relu, out_dtype=out_dtype)
    return y.reshape(B, N, OH, OW, p['w'].shape[2])


def maxpool3x3s2p1(x):
    """nn.MaxPool2d(3, stride=2, padding=1); XLA shifted-slice max (no patch tensor)."""
    B, N, H, W, C = x.shape
    xp = jnp.pad(x, ((0, 0), (0, 0), (1, 1), (1, 1), (0, 0)),
                 constant_values=float('-inf'))
    OH = (H + 2 - 3) // 2 + 1
    OW = (W + 2 - 3) // 2 + 1
    out = None
    for i in range(3):
        for j in range(3):
            v = xp[:, :, i:i + 2 * OH:2, j:j + 2 * OW:2, :]
            out = v if out is None else jnp.maximum(out, v)
    return out


# --------------------------------------------------------------------------
# Parameters: branch-stacked, GEMM-laid-out, channel-padded bf16 weights
# --------------------------------------------------------------------------

# (planes, num_blocks, first-block stride) — strides=(2,2,2,1): conv1 stride 2,
# layer1 stride 1, layer2/3 stride 2, layer4 stride 1.
LAYER_CFG = [(64, 3, 1), (128, 4, 2), (256, 6, 2), (512, 3, 1)]


class _KeyGen:
    def __init__(self, key):
        self.key = key
        self.i = 0

    def __call__(self):
        self.i += 1
        return jax.random.fold_in(self.key, self.i)


def _he_conv(key, cout, cin, k):
    std = math.sqrt(2.0 / (cin * k * k))
    return jax.random.normal(key, (cout, cin, k, k), jnp.float32) * std


def _bn_affine(key, c):
    k1, k2, k3, k4 = jax.random.split(key, 4)
    gamma = 1.0 + 0.05 * jax.random.normal(k1, (c,), jnp.float32)
    beta = 0.05 * jax.random.normal(k2, (c,), jnp.float32)
    mean = 0.05 * jax.random.normal(k3, (c,), jnp.float32)
    var = 1.0 + 0.05 * jnp.abs(jax.random.normal(k4, (c,), jnp.float32))
    scale = gamma * jax.lax.rsqrt(var + 1e-5)
    bias = beta - mean * scale
    return scale, bias


def _conv_bn_layer(kg, cin, cout, k, cin_pad=None):
    """Two independent branch weights, stacked and pre-laid-out for the GEMM."""
    cin_pad = _cpad(cin) if cin_pad is None else cin_pad
    cout_pad = _cpad(cout)
    K = k * k * cin_pad
    Kp = _round_up(K, 128)
    ws, ss, bs = [], [], []
    for _ in range(2):                              # spotlight, compensation
        w = _he_conv(kg(), cout, cin, k)            # (cout, cin, k, k)
        wt = jnp.transpose(w, (2, 3, 1, 0))         # (k, k, cin, cout)
        wt = jnp.pad(wt, ((0, 0), (0, 0), (0, cin_pad - cin), (0, cout_pad - cout)))
        wt = wt.reshape(K, cout_pad)
        wt = jnp.pad(wt, ((0, Kp - K), (0, 0)))
        ws.append(wt.astype(jnp.bfloat16))
        scale, bias = _bn_affine(kg(), cout)
        ss.append(jnp.pad(scale, (0, cout_pad - cout)))
        bs.append(jnp.pad(bias, (0, cout_pad - cout)))
    cp = cout_pad
    return {'w': jnp.stack(ws),
            'scale': jnp.stack(ss).reshape(2, 1, cp),
            'bias': jnp.stack(bs).reshape(2, 1, cp)}


def _classifier_layer(kg):
    npad = _cpad(20)
    ws = []
    for _ in range(2):
        w = jax.random.normal(kg(), (20, 2048), jnp.float32) * math.sqrt(2.0 / 2048)
        wt = jnp.pad(w.T, ((0, 0), (0, npad - 20)))          # (2048, 128)
        ws.append(wt.astype(jnp.bfloat16))
    return {'w': jnp.stack(ws),
            'scale': jnp.ones((2, 1, npad), jnp.float32),
            'bias': jnp.zeros((2, 1, npad), jnp.float32)}


def init_net(key):
    kg = _KeyGen(key)
    params = {'stem': _conv_bn_layer(kg, 3, 64, 7, cin_pad=3), 'layers': []}
    inplanes = 64
    for planes, nblocks, stride in LAYER_CFG:
        blocks = []
        for b in range(nblocks):
            s = stride if b == 0 else 1
            blk = {'conv1': _conv_bn_layer(kg, inplanes, planes, 1),
                   'conv2': _conv_bn_layer(kg, planes, planes, 3),
                   'conv3': _conv_bn_layer(kg, planes, planes * 4, 1)}
            if b == 0 and (s != 1 or inplanes != planes * 4):
                blk['ds'] = _conv_bn_layer(kg, inplanes, planes * 4, 1)
            blocks.append(blk)
            inplanes = planes * 4
        params['layers'].append(blocks)
    params['cls'] = _classifier_layer(kg)
    return params


# --------------------------------------------------------------------------
# Forward
# --------------------------------------------------------------------------

def bottleneck_forward(x, blk, stride):
    out = conv_bn(x, blk['conv1'], 1, 1, 0, relu=True)
    out = conv_bn(out, blk['conv2'], 3, stride, 1, relu=True)
    if 'ds' in blk:
        identity = conv_bn(x, blk['ds'], 1, stride, 0, relu=False)
    else:
        identity = x
    # conv3 + bn3 + residual add + ReLU fused in one GEMM epilogue
    return conv_bn(out, blk['conv3'], 1, 1, 0, relu=True, residual=identity)


def backbone_forward(x, params):
    x = conv_bn(x, params['stem'], 7, 2, 3, relu=True)
    x = maxpool3x3s2p1(x)
    for blocks, (planes, nblocks, stride) in zip(params['layers'], LAYER_CFG):
        for b in range(nblocks):
            s = stride if b == 0 else 1
            x = bottleneck_forward(x, blocks[b], s)
    return x


def net_forward(x_nchw, params):
    # NCHW -> NHWC, bf16; both branches see the same input (leading branch dim).
    x = jnp.transpose(x_nchw, (0, 2, 3, 1)).astype(jnp.bfloat16)
    x = jnp.broadcast_to(x[None], (2,) + x.shape)          # (branch, N, H, W, 3)

    feat = backbone_forward(x, params)                      # (2, N, H, W, 2048)
    B, N, H, W, C = feat.shape

    # Classifier head folded into ONE GEMM per (fused) call:
    #   Y = feat @ W ;  cam = relu(Y) ;  logits = mean_{H,W}(Y)  (bias-free conv)
    y = batched_matmul_affine(feat.reshape(B, N * H * W, C), params['cls']['w'],
                              params['cls']['scale'], params['cls']['bias'],
                              relu=False, out_dtype=jnp.float32)
    y = y[..., :20].reshape(B, N, H, W, 20)
    cam = jnp.maximum(y, 0.0)

    def head(b):
        logits = jnp.mean(y[b], axis=(1, 2))                            # (N, 20)
        c = cam[b, 0] + jnp.flip(cam[b, 1], axis=1)                     # (H, W, 20)
        return logits, jnp.transpose(c, (2, 0, 1))                      # (20, H, W)

    sp_logits, sp_cam = head(0)
    cp_logits, cp_cam = head(1)
    return sp_logits, sp_cam, cp_logits, cp_cam


# --------------------------------------------------------------------------
# Self-check of the fused GEMM kernel against a pure-JAX reference
# --------------------------------------------------------------------------

def _selfcheck_gemm():
    key = jax.random.PRNGKey(42)
    ka, kb, kr, ks, kt = jax.random.split(key, 5)
    B, M, K, N = 2, 64, 256, 256
    a = jax.random.normal(ka, (B, M, K), jnp.float32).astype(jnp.bfloat16)
    b = jax.random.normal(kb, (B, K, N), jnp.float32).astype(jnp.bfloat16) * 0.05
    r = jax.random.normal(kr, (B, M, N), jnp.float32).astype(jnp.bfloat16)
    s = 1.0 + 0.1 * jax.random.normal(ks, (B, 1, N), jnp.float32)
    t = 0.1 * jax.random.normal(kt, (B, 1, N), jnp.float32)

    got = batched_matmul_affine(a, b, s, t, residual=r, relu=True,
                                out_dtype=jnp.float32)
    ref = jnp.einsum('bmk,bkn->bmn', a.astype(jnp.float32), b.astype(jnp.float32))
    ref = jnp.maximum(ref * s + t + r.astype(jnp.float32), 0.0)
    assert jnp.allclose(got, ref, rtol=1e-2, atol=1e-2), "GEMM self-check failed"


if __name__ == "__main__":
    _selfcheck_gemm()

    key = jax.random.PRNGKey(0)
    kp, kx = jax.random.split(key)
    params = init_net(kp)
    # batch of 2 (original + horizontally-flipped image is the intended use),
    # 3 input channels, 32x32 spatial -> 2x2 final feature map.
    x = jax.random.normal(kx, (2, 3, 32, 32), jnp.float32)

    fwd = jax.jit(net_forward)
    sp_logits, sp_cam, cp_logits, cp_cam = fwd(x, params)
    jax.block_until_ready((sp_logits, sp_cam, cp_logits, cp_cam))

    assert sp_logits.shape == (2, 20) and cp_logits.shape == (2, 20)
    assert sp_cam.shape == (20, 2, 2) and cp_cam.shape == (20, 2, 2)
    assert jnp.all(jnp.isfinite(sp_logits)) and jnp.all(jnp.isfinite(cp_cam))
    print("KERNEL_OK")
</pallas_src>

<mosaic_0001>
module attributes {stable_mosaic.version = 11 : i64} {
  func.func @_gemm_res_kernel(%arg0: i32, %arg1: i32, %arg2: i32, %arg3: memref<1x64x256xbf16, #tpu.memory_space<vmem>>, %arg4: memref<1x256x256xbf16, #tpu.memory_space<vmem>>, %arg5: memref<1x1x256xf32, #tpu.memory_space<vmem>>, %arg6: memref<1x1x256xf32, #tpu.memory_space<vmem>>, %arg7: memref<1x64x256xbf16, #tpu.memory_space<vmem>>, %arg8: memref<1x64x256xf32, #tpu.memory_space<vmem>>) attributes {dimension_semantics = [#tpu.dimension_semantics<parallel>, #tpu.dimension_semantics<parallel>, #tpu.dimension_semantics<parallel>], iteration_bounds = array<i64: 2, 1, 1>, scalar_prefetch = 0 : i64, scratch_operands = 0 : i64, tpu.core_type = #tpu.core_type<tc>, window_params = [{transform_indices = @transform_0, window_bounds = array<i64: 1, 64, 256>}, {transform_indices = @transform_1, window_bounds = array<i64: 1, 256, 256>}, {transform_indices = @transform_2, window_bounds = array<i64: 1, 1, 256>}, {transform_indices = @transform_3, window_bounds = array<i64: 1, 1, 256>}, {transform_indices = @transform_4, window_bounds = array<i64: 1, 64, 256>}, {transform_indices = @transform_5, window_bounds = array<i64: 1, 64, 256>}]} {
    %c0 = arith.constant 0 : index
    %c0_0 = arith.constant 0 : index
    %c0_1 = arith.constant 0 : index
    %0 = vector.load %arg3[%c0, %c0_0, %c0_1] : memref<1x64x256xbf16, #tpu.memory_space<vmem>>, vector<1x64x256xbf16>
    %1 = vector.shape_cast %0 : vector<1x64x256xbf16> to vector<64x256xbf16>
    %c0_2 = arith.constant 0 : index
    %c0_3 = arith.constant 0 : index
    %c0_4 = arith.constant 0 : index
    %2 = vector.load %arg4[%c0_2, %c0_3, %c0_4] : memref<1x256x256xbf16, #tpu.memory_space<vmem>>, vector<1x256x256xbf16>
    %3 = vector.shape_cast %2 : vector<1x256x256xbf16> to vector<256x256xbf16>
    %cst = arith.constant dense<0.000000e+00> : vector<64x256xf32>
    %4 = tpu.matmul %1, %3, %cst {dimension_numbers = #tpu.dot_dimension_numbers<[1], [0], [0], [1], [0, 0, 1, 1], [], []>} : vector<64x256xbf16>, vector<256x256xbf16>, vector<64x256xf32> -> vector<64x256xf32>
    %c0_5 = arith.constant 0 : index
    %c0_6 = arith.constant 0 : index
    %c0_7 = arith.constant 0 : index
    %5 = vector.load %arg5[%c0_5, %c0_6, %c0_7] : memref<1x1x256xf32, #tpu.memory_space<vmem>>, vector<1x1x256xf32>
    %6 = vector.shape_cast %5 : vector<1x1x256xf32> to vector<1x256xf32>
    %7 = vector.broadcast %6 : vector<1x256xf32> to vector<64x256xf32>
    %8 = arith.mulf %4, %7 : vector<64x256xf32>
    %c0_8 = arith.constant 0 : index
    %c0_9 = arith.constant 0 : index
    %c0_10 = arith.constant 0 : index
    %9 = vector.load %arg6[%c0_8, %c0_9, %c0_10] : memref<1x1x256xf32, #tpu.memory_space<vmem>>, vector<1x1x256xf32>
    %10 = vector.shape_cast %9 : vector<1x1x256xf32> to vector<1x256xf32>
    %11 = vector.broadcast %10 : vector<1x256xf32> to vector<64x256xf32>
    %12 = arith.addf %8, %11 : vector<64x256xf32>
    %c0_11 = arith.constant 0 : index
    %c0_12 = arith.constant 0 : index
    %c0_13 = arith.constant 0 : index
    %13 = vector.load %arg7[%c0_11, %c0_12, %c0_13] : memref<1x64x256xbf16, #tpu.memory_space<vmem>>, vector<1x64x256xbf16>
    %14 = vector.shape_cast %13 : vector<1x64x256xbf16> to vector<64x256xbf16>
    %15 = arith.extf %14 : vector<64x256xbf16> to vector<64x256xf32>
    %16 = arith.addf %12, %15 : vector<64x256xf32>
    %cst_14 = arith.constant 0.000000e+00 : f32
    %17 = vector.broadcast %cst_14 : f32 to vector<64x256xf32>
    %18 = arith.maximumf %16, %17 : vector<64x256xf32>
    %c0_15 = arith.constant 0 : index
    %c0_16 = arith.constant 0 : index
    %c0_17 = arith.constant 0 : index
    %19 = vector.load %arg8[%c0_15, %c0_16, %c0_17] : memref<1x64x256xf32, #tpu.memory_space<vmem>>, vector<1x64x256xf32>
    %20 = vector.shape_cast %19 : vector<1x64x256xf32> to vector<64x256xf32>
    %21 = vector.shape_cast %18 : vector<64x256xf32> to vector<1x64x256xf32>
    tpu.vector_store %arg8[%c0_15, %c0_16, %c0_17], %21 {strides = array<i32>} : memref<1x64x256xf32, #tpu.memory_space<vmem>>, vector<1x64x256xf32>,
    return
  }
  func.func @transform_0(%arg0: i32, %arg1: i32, %arg2: i32) -> (i32, i32, i32) {
    %c0_i32 = arith.constant 0 : i32
    %c0_i32_0 = arith.constant 0 : i32
    return %arg0, %arg1, %c0_i32 : i32, i32, i32
  }
  func.func @transform_1(%arg0: i32, %arg1: i32, %arg2: i32) -> (i32, i32, i32) {
    %c0_i32 = arith.constant 0 : i32
    %c0_i32_0 = arith.constant 0 : i32
    return %arg0, %c0_i32, %arg2 : i32, i32, i32
  }
  func.func @transform_2(%arg0: i32, %arg1: i32, %arg2: i32) -> (i32, i32, i32) {
    %c0_i32 = arith.constant 0 : i32
    %c0_i32_0 = arith.constant 0 : i32
    return %arg0, %c0_i32, %arg2 : i32, i32, i32
  }
  func.func @transform_3(%arg0: i32, %arg1: i32, %arg2: i32) -> (i32, i32, i32) {
    %c0_i32 = arith.constant 0 : i32
    %c0_i32_0 = arith.constant 0 : i32
    return %arg0, %c0_i32, %arg2 : i32, i32, i32
  }
  func.func @transform_4(%arg0: i32, %arg1: i32, %arg2: i32) -> (i32, i32, i32) {
    %c0_i32 = arith.constant 0 : i32
    return %arg0, %arg1, %arg2 : i32, i32, i32
  }
  func.func @transform_5(%arg0: i32, %arg1: i32, %arg2: i32) -> (i32, i32, i32) {
    %c0_i32 = arith.constant 0 : i32
    return %arg0, %arg1, %arg2 : i32, i32, i32
  }
}

</mosaic_0001>

<llo_original>
// kernel: tpu_custom_call.1
$region0: #{tpu_custom_call.1}
  #allocation0 [shape = 'u32[]', space=smem, size = 0x4, offset = 0x4, fixed_abs, tag = 'smem constant byte address 0x4 - core index']
  #allocation1 [shape = 'u32[144,128]{1,0:T(1,128)}', space=vmem, size = 0x12000, scoped, tag = 'internal scratch']
  %s0 = inlined_call_operand.hbm [shape: bf16[2,64,256], index: 0, kind: input, shape index: {}]
  %s1 = inlined_call_operand.hbm [shape: bf16[2,256,256], index: 1, kind: input, shape index: {}]
  %s2 = inlined_call_operand.hbm [shape: f32[2,1,256], index: 2, kind: input, shape index: {}]
  %s3 = inlined_call_operand.vmem [shape: f32[2,1,256], index: 3, kind: input, shape index: {}]
  %s4 = inlined_call_operand.hbm [shape: bf16[2,64,256], index: 4, kind: input, shape index: {}]
  %s5 = inlined_call_operand.hbm [shape: f32[2,64,256], index: 5, kind: output, shape index: {}]
  %s6 = sld [smem:[#allocation0]]
  $region69: #{tpu_custom_call.1} parent=0
    _
  %s8 = ssub.s32 1, %s6
  %s9 = scalar_select 0, %s8, %s6
  $region1: #{tpu_custom_call.1} parent=0
    #allocation2 [shape = 'u8[65536]{0}', space=vmem, size = 0x10000, scoped, tag = 'input window, operand 0']
    #allocation3 [shape = 's32[2]{0}', space=sflag, size = 0x8, scoped, tag = 'scoped memory for tpu_custom_call.1']
    #allocation4 [shape = 's32[2]{0}', space=sflag, size = 0x8, scoped, tag = 'scoped memory for tpu_custom_call.1']
    #allocation5 [shape = 'u8[262144]{0}', space=vmem, size = 0x40000, scoped, tag = 'input window, operand 1']
    #allocation6 [shape = 's32[2]{0}', space=sflag, size = 0x8, scoped, tag = 'scoped memory for tpu_custom_call.1']
    #allocation7 [shape = 'u8[2048]{0}', space=vmem, size = 0x800, scoped, tag = 'input window, operand 2']
    #allocation8 [shape = 'u8[65536]{0}', space=vmem, size = 0x10000, scoped, tag = 'input window, operand 4']
    #allocation9 [shape = 's32[2]{0}', space=sflag, size = 0x8, scoped, tag = 'scoped memory for tpu_custom_call.1']
    #allocation10 [shape = 'u8[131072]{0}', space=vmem, size = 0x20000, scoped, tag = 'output window, operand 0']
    %10 = vsyncpa [#allocation3], 0
    %s11 = scalar_lea.sflag [#allocation3], 1
    %12 = vsyncpa %s11, 0
    %13 = vsyncpa [#allocation6], 0
    %s14 = scalar_lea.sflag [#allocation6], 1
    %15 = vsyncpa %s14, 0
    %16 = vsyncpa [#allocation9], 0
    %s17 = scalar_lea.sflag [#allocation9], 1
    %18 = vsyncpa %s17, 0
    %19 = vsyncpa [#allocation4], 0
    %s20 = scalar_lea.sflag [#allocation4], 1
    %21 = vsyncpa %s20, 0
    loop: start=0, step=1, limit=4
    $region2: #{tpu_custom_call.1} parent=1 // loop_pre_header
      _
    $region3: #{tpu_custom_call.1} parent=1 // loop_header
      %s23 = sphi 0, %s27
      %p24 = scmp.ge.s32.totalorder %s23, 4
      %s30 = sphi 0, %s49
      %s31 = sphi 0, %s45
      %s32 = sphi 0, %s41
      %s33 = sphi 0, %s30
      %s34 = sphi 0, %s31
      %s35 = sphi 0, %s32
      %s36 = sphi 0, %s33
      %s37 = sphi 0, %s34
      %s38 = sphi 0, %s35
      %s54 = sphi 0, %s56
      %s57 = sphi 0, %s54
      %s58 = sphi 0, %s57
      %s74 = sphi 0, %s58
      %s82 = sphi 0, %s84
      %s85 = sphi 0, %s82
      %s86 = sphi 0, %s85
      %s102 = sphi 0, %s86
      %s110 = sphi 0, %s112
      %s113 = sphi 0, %s110
      %s114 = sphi 0, %s113
      %s130 = sphi 0, %s114
      %s138 = sphi 0, %s140
      %s141 = sphi 0, %s138
      %s142 = sphi 0, %s141
      %s158 = sphi 0, %s142
      %s168 = sphi 0, %s170
      %s171 = sphi 0, %s168
      %s172 = sphi 0, %s171
      %s188 = sphi 0, %s172
      %s198 = sphi 0, %s200
      %s201 = sphi 0, %s198
      %s202 = sphi 0, %s201
      %s218 = sphi 0, %s202
    $region4: #{tpu_custom_call.1} parent=1 // loop_header_branch
      %26 = sbr.rel (%p24) target = $region8
    $region5: #{tpu_custom_call.1} parent=1 // loop_body
      %s28 = ssub.s32 %s23, 1
      %s29 = ssub.s32 %s23, 2
      %s39 = sadd.s32 1, %s32
      %p40 = scmp.ge.s32.totalorder %s39, 1
      %s41 = scalar_select %p40, 0, %s39
      %s42 = sadd.s32 1, %s31
      %s43 = scalar_select %p40, %s42, %s31
      %p44 = scmp.ge.s32.totalorder %s43, 1
      %s45 = scalar_select %p44, 0, %s43
      %s46 = sadd.s32 1, %s30
      %s47 = scalar_select %p44, %s46, %s30
      %p48 = scmp.ge.s32.totalorder %s47, 2
      %s49 = scalar_select %p48, 0, %s47
      %s50 = ssub.s32 %s30, %s49
      %s51 = ssub.s32 %s31, %s45
      %s52 = sor.u32 %s50, %s51
      %p53 = scmp.eq.s32.totalorder %s52, 0
      %s55 = sadd.s32 %s54, 1
      %s56 = scalar_select %p53, %s54, %s55
      %p59 = pneg %p53
      %p60 = scmp.eq.s32.totalorder %s23, 1
      %p61 = por %p59, %p60
      %p62 = scmp.ne.s32.totalorder %s54, %s57
      %p63 = scmp.eq.s32.totalorder %s23, 0
      %p64 = por %p62, %p63
      %p65 = scmp.ne.s32.totalorder %s54, %s57
      %p66 = scmp.eq.s32.totalorder %s28, 1
      %p67 = por %p65, %p66
      %p68 = scmp.ne.s32.totalorder %s57, %s58
      %p69 = scmp.eq.s32.totalorder %s28, 0
      %p70 = por %p68, %p69
      %p71 = scmp.ne.s32.totalorder %s57, %s58
      %p72 = scmp.eq.s32.totalorder %s29, 1
      %p73 = por %p71, %p72
      %p75 = scmp.ne.s32.totalorder %s58, %s74
      %p76 = scmp.eq.s32.totalorder %s29, 0
      %p77 = por %p75, %p76
      %s78 = ssub.s32 %s30, %s49
      %s79 = ssub.s32 %s32, %s41
      %s80 = sor.u32 %s78, %s79
      %p81 = scmp.eq.s32.totalorder %s80, 0
      %s83 = sadd.s32 %s82, 1
      %s84 = scalar_select %p81, %s82, %s83
      %p87 = pneg %p81
      %p88 = scmp.eq.s32.totalorder %s23, 1
      %p89 = por %p87, %p88
      %p90 = scmp.ne.s32.totalorder %s82, %s85
      %p91 = scmp.eq.s32.totalorder %s23, 0
      %p92 = por %p90, %p91
      %p93 = scmp.ne.s32.totalorder %s82, %s85
      %p94 = scmp.eq.s32.totalorder %s28, 1
      %p95 = por %p93, %p94
      %p96 = scmp.ne.s32.totalorder %s85, %s86
      %p97 = scmp.eq.s32.totalorder %s28, 0
      %p98 = por %p96, %p97
      %p99 = scmp.ne.s32.totalorder %s85, %s86
      %p100 = scmp.eq.s32.totalorder %s29, 1
      %p101 = por %p99, %p100
      %p103 = scmp.ne.s32.totalorder %s86, %s102
      %p104 = scmp.eq.s32.totalorder %s29, 0
      %p105 = por %p103, %p104
      %s106 = ssub.s32 %s30, %s49
      %s107 = ssub.s32 %s32, %s41
      %s108 = sor.u32 %s106, %s107
      %p109 = scmp.eq.s32.totalorder %s108, 0
      %s111 = sadd.s32 %s110, 1
      %s112 = scalar_select %p109, %s110, %s111
      %p115 = pneg %p109
      %p116 = scmp.eq.s32.totalorder %s23, 1
      %p117 = por %p115, %p116
      %p118 = scmp.ne.s32.totalorder %s110, %s113
      %p119 = scmp.eq.s32.totalorder %s23, 0
      %p120 = por %p118, %p119
      %p121 = scmp.ne.s32.totalorder %s110, %s113
      %p122 = scmp.eq.s32.totalorder %s28, 1
      %p123 = por %p121, %p122
      %p124 = scmp.ne.s32.totalorder %s113, %s114
      %p125 = scmp.eq.s32.totalorder %s28, 0
      %p126 = por %p124, %p125
      %p127 = scmp.ne.s32.totalorder %s113, %s114
      %p128 = scmp.eq.s32.totalorder %s29, 1
      %p129 = por %p127, %p128
      %p131 = scmp.ne.s32.totalorder %s114, %s130
      %p132 = scmp.eq.s32.totalorder %s29, 0
      %p133 = por %p131, %p132
      %s134 = ssub.s32 %s30, %s49
      %s135 = ssub.s32 %s32, %s41
      %s136 = sor.u32 %s134, %s135
      %p137 = scmp.eq.s32.totalorder %s136, 0
      %s139 = sadd.s32 %s138, 1
      %s140 = scalar_select %p137, %s138, %s139
      %p143 = pneg %p137
      %p144 = scmp.eq.s32.totalorder %s23, 1
      %p145 = por %p143, %p144
      %p146 = scmp.ne.s32.totalorder %s138, %s141
      %p147 = scmp.eq.s32.totalorder %s23, 0
      %p148 = por %p146, %p147
      %p149 = scmp.ne.s32.totalorder %s138, %s141
      %p150 = scmp.eq.s32.totalorder %s28, 1
      %p151 = por %p149, %p150
      %p152 = scmp.ne.s32.totalorder %s141, %s142
      %p153 = scmp.eq.s32.totalorder %s28, 0
      %p154 = por %p152, %p153
      %p155 = scmp.ne.s32.totalorder %s141, %s142
      %p156 = scmp.eq.s32.totalorder %s29, 1
      %p157 = por %p155, %p156
      %p159 = scmp.ne.s32.totalorder %s142, %s158
      %p160 = scmp.eq.s32.totalorder %s29, 0
      %p161 = por %p159, %p160
      %s162 = ssub.s32 %s30, %s49
      %s163 = ssub.s32 %s31, %s45
      %s164 = sor.u32 %s162, %s163
      %s165 = ssub.s32 %s32, %s41
      %s166 = sor.u32 %s164, %s165
      %p167 = scmp.eq.s32.totalorder %s166, 0
      %s169 = sadd.s32 %s168, 1
      %s170 = scalar_select %p167, %s168, %s169
      %p173 = pneg %p167
      %p174 = scmp.eq.s32.totalorder %s23, 1
      %p175 = por %p173, %p174
      %p176 = scmp.ne.s32.totalorder %s168, %s171
      %p177 = scmp.eq.s32.totalorder %s23, 0
      %p178 = por %p176, %p177
      %p179 = scmp.ne.s32.totalorder %s168, %s171
      %p180 = scmp.eq.s32.totalorder %s28, 1
      %p181 = por %p179, %p180
      %p182 = scmp.ne.s32.totalorder %s171, %s172
      %p183 = scmp.eq.s32.totalorder %s28, 0
      %p184 = por %p182, %p183
      %p185 = scmp.ne.s32.totalorder %s171, %s172
      %p186 = scmp.eq.s32.totalorder %s29, 1
      %p187 = por %p185, %p186
      %p189 = scmp.ne.s32.totalorder %s172, %s188
      %p190 = scmp.eq.s32.totalorder %s29, 0
      %p191 = por %p189, %p190
      %s192 = ssub.s32 %s30, %s49
      %s193 = ssub.s32 %s31, %s45
      %s194 = sor.u32 %s192, %s193
      %s195 = ssub.s32 %s32, %s41
      %s196 = sor.u32 %s194, %s195
      %p197 = scmp.eq.s32.totalorder %s196, 0
      %s199 = sadd.s32 %s198, 1
      %s200 = scalar_select %p197, %s198, %s199
      %p203 = pneg %p197
      %p204 = scmp.eq.s32.totalorder %s23, 1
      %p205 = por %p203, %p204
      %p206 = scmp.ne.s32.totalorder %s198, %s201
      %p207 = scmp.eq.s32.totalorder %s23, 0
      %p208 = por %p206, %p207
      %p209 = scmp.ne.s32.totalorder %s198, %s201
      %p210 = scmp.eq.s32.totalorder %s28, 1
      %p211 = por %p209, %p210
      %p212 = scmp.ne.s32.totalorder %s201, %s202
      %p213 = scmp.eq.s32.totalorder %s28, 0
      %p214 = por %p212, %p213
      %p215 = scmp.ne.s32.totalorder %s201, %s202
      %p216 = scmp.eq.s32.totalorder %s29, 1
      %p217 = por %p215, %p216
      %p219 = scmp.ne.s32.totalorder %s202, %s218
      %p220 = scmp.eq.s32.totalorder %s29, 0
      %p221 = por %p219, %p220
      %p222 = scmp.le.s32.totalorder 1, %s23
      %p223 = scmp.lt.s32.totalorder %s23, 3
      %p224 = pnand %p222, %p223
      %p225 = pneg %p224
      // Predicated region
      $region9: #{tpu_custom_call.1} parent=5 // pred_check
        _
      $region10: #{tpu_custom_call.1} parent=5 // pred_check_branch
        %227 = sbr.rel (%p224) target = $region12
      $region11: #{tpu_custom_call.1} parent=5 // pred_region
        %s228 = ssub.s32 %s23, 1
      $region12: #{tpu_custom_call.1} parent=5 // pred_fallthru
        _
      %p229 = scmp.lt.s32.totalorder %s23, 2
      // Predicated region
      $region13: #{tpu_custom_call.1} parent=5 // pred_check
        %p230 = pneg %p229
      $region14: #{tpu_custom_call.1} parent=5 // pred_check_branch
        %232 = sbr.rel (%p230) target = $region16
      $region15: #{tpu_custom_call.1} parent=5 // pred_region
        // Predicated region
        $region17: #{tpu_custom_call.1} parent=15 // pred_check
          %p233 = pneg %p64
        $region18: #{tpu_custom_call.1} parent=15 // pred_check_branch
          %235 = sbr.rel (%p233) target = $region20
        $region19: #{tpu_custom_call.1} parent=15 // pred_region
          %s236 = sand.u32 %s54, 1
          %s237 = scalar_lea.sflag [#allocation3], %s236
          %s238 = sand.u32 %s54, 1
          %s239 = smul.addr %s238, 64
          %s240 = scalar_lea.vmem [#allocation2], %s239
          %s241 = smul.u32 8, %s31
          %s243 = ssub.s32 1024, 1024
          %244 = vsyncadd %s237, %s243
          %s245 = smul.addr %s241, 2
          %s246 = smul.addr %s30, 16
          %s247 = sadd.s32 %s245, %s246
          %s248 = smul.addr %s247, 64
          %s249 = scalar_lea.hbm %s0, %s248
          %s250 = sshll.u32 %s240, 4
          %s251 = int_to_ptr.vmem [resolvable:$true] %s250
          %256 = dma.hbm_to_vmem [thread:$0]  %s249, 1024, %s251, %s237, 128, 128, 8
        $region20: #{tpu_custom_call.1} parent=15 // pred_fallthru
          _
        // Predicated region
        $region21: #{tpu_custom_call.1} parent=15 // pred_check
          %p257 = pneg %p92
        $region22: #{tpu_custom_call.1} parent=15 // pred_check_branch
          %259 = sbr.rel (%p257) target = $region24
        $region23: #{tpu_custom_call.1} parent=15 // pred_region
          %s260 = sand.u32 %s23, 1
          %s261 = scalar_lea.sflag [#allocation6], %s260
          %s262 = sand.u32 %s82, 1
          %s263 = smul.addr %s262, 256
          %s264 = scalar_lea.vmem [#allocation5], %s263
          %s265 = smul.u32 2, %s32
          %s267 = ssub.s32 4096, 4096
          %268 = vsyncadd %s261, %s267
          %s269 = smul.addr %s30, 64
          %s270 = sadd.s32 %s265, %s269
          %s271 = smul.addr %s270, 64
          %s272 = scalar_lea.hbm %s1, %s271
          %s273 = sshll.u32 %s264, 4
          %s274 = int_to_ptr.vmem [resolvable:$true] %s273
          %279 = dma.hbm_to_vmem [thread:$0]  %s272, 4096, %s274, %s261, 128, 128, 8
        $region24: #{tpu_custom_call.1} parent=15 // pred_fallthru
          _
        // Predicated region
        $region25: #{tpu_custom_call.1} parent=15 // pred_check
          %p280 = pneg %p120
        $region26: #{tpu_custom_call.1} parent=15 // pred_check_branch
          %282 = sbr.rel (%p280) target = $region28
        $region27: #{tpu_custom_call.1} parent=15 // pred_region
          %s283 = sand.u32 %s23, 1
          %s284 = scalar_lea.sflag [#allocation6], %s283
          %s285 = sand.u32 %s110, 1
          %s286 = smul.addr %s285, 2
          %s287 = scalar_lea.vmem [#allocation7], %s286
          %s288 = smul.u32 2, %s32
          %s290 = ssub.s32 32, 32
          %291 = vsyncadd %s284, %s290
          %s292 = smul.addr %s30, 2
          %s293 = sadd.s32 %s288, %s292
          %s294 = smul.addr %s293, 16
          %s295 = scalar_lea.hbm %s2, %s294
          %s297 = sshll.u32 %s287, 4
          %s298 = int_to_ptr.vmem [resolvable:$true] %s297
          %300 = dma.hbm_to_vmem [thread:$0]  %s295, 32, %s298, %s284
        $region28: #{tpu_custom_call.1} parent=15 // pred_fallthru
          _
        // Predicated region
        $region29: #{tpu_custom_call.1} parent=15 // pred_check
          %p301 = pneg %p148
        $region30: #{tpu_custom_call.1} parent=15 // pred_check_branch
          %303 = sbr.rel (%p301) target = $region32
        $region31: #{tpu_custom_call.1} parent=15 // pred_region
          %s304 = smul.u32 2, %s32
          %p305 = scmp.lt.s32.totalorder %s30, 1
          %s306 = scalar_select %p305, %s30, 1
          %p307 = scmp.lt.s32.totalorder %s304, 1
          %s308 = scalar_select %p307, %s304, 1
          %s309 = smul.addr %s306, 2
          %s310 = sadd.s32 %s308, %s309
          %s311 = scalar_lea.vmem %s3, %s310
          %s312 = smul.u32 2, %s32
        $region32: #{tpu_custom_call.1} parent=15 // pred_fallthru
          _
        // Predicated region
        $region33: #{tpu_custom_call.1} parent=15 // pred_check
          %p313 = pneg %p178
        $region34: #{tpu_custom_call.1} parent=15 // pred_check_branch
          %315 = sbr.rel (%p313) target = $region36
        $region35: #{tpu_custom_call.1} parent=15 // pred_region
          %s316 = sand.u32 %s168, 1
          %s317 = scalar_lea.sflag [#allocation9], %s316
          %s318 = sand.u32 %s168, 1
          %s319 = smul.addr %s318, 64
          %s320 = scalar_lea.vmem [#allocation8], %s319
          %s321 = smul.u32 8, %s31
          %s322 = smul.u32 2, %s32
          %s324 = ssub.s32 1024, 1024
          %325 = vsyncadd %s317, %s324
          %s326 = smul.addr %s321, 2
          %s327 = sadd.s32 %s322, %s326
          %s328 = smul.addr %s30, 16
          %s329 = sadd.s32 %s327, %s328
          %s330 = smul.addr %s329, 64
          %s331 = scalar_lea.hbm %s4, %s330
          %s332 = sshll.u32 %s320, 4
          %s333 = int_to_ptr.vmem [resolvable:$true] %s332
          %338 = dma.hbm_to_vmem [thread:$0]  %s331, 1024, %s333, %s317, 128, 128, 8
        $region36: #{tpu_custom_call.1} parent=15 // pred_fallthru
          _
      $region16: #{tpu_custom_call.1} parent=5 // pred_fallthru
        _
      %p339 = scmp.le.s32.totalorder 1, %s23
      %p340 = scmp.lt.s32.totalorder %s23, 3
      %p341 = pnand %p339, %p340
      %p342 = pneg %p341
      // Predicated region
      $region37: #{tpu_custom_call.1} parent=5 // pred_check
        _
      $region38: #{tpu_custom_call.1} parent=5 // pred_check_branch
        %344 = sbr.rel (%p341) target = $region40
      $region39: #{tpu_custom_call.1} parent=5 // pred_region
        %s345 = ssub.s32 %s23, 1
        %s346 = sand.u32 %s57, 1
        %s347 = scalar_lea.sflag [#allocation3], %s346
        %s348 = sand.u32 %s57, 1
        %s349 = smul.addr %s348, 64
        %s350 = scalar_lea.vmem [#allocation2], %s349
        // Predicated region
        $region41: #{tpu_custom_call.1} parent=39 // pred_check
          %p351 = pneg %p70
        $region42: #{tpu_custom_call.1} parent=39 // pred_check_branch
          %353 = sbr.rel (%p351) target = $region44
        $region43: #{tpu_custom_call.1} parent=39 // pred_region
          %354 = dma.done %s347, 1024
        $region44: #{tpu_custom_call.1} parent=39 // pred_fallthru
          _
        %s355 = sand.u32 %s28, 1
        %s356 = scalar_lea.sflag [#allocation6], %s355
        %s357 = sand.u32 %s85, 1
        %s358 = smul.addr %s357, 256
        %s359 = scalar_lea.vmem [#allocation5], %s358
        // Predicated region
        $region45: #{tpu_custom_call.1} parent=39 // pred_check
          %p360 = pneg %p98
        $region46: #{tpu_custom_call.1} parent=39 // pred_check_branch
          %362 = sbr.rel (%p360) target = $region48
        $region47: #{tpu_custom_call.1} parent=39 // pred_region
          %363 = dma.done %s356, 4096
        $region48: #{tpu_custom_call.1} parent=39 // pred_fallthru
          _
        %s364 = sand.u32 %s28, 1
        %s365 = scalar_lea.sflag [#allocation6], %s364
        %s366 = sand.u32 %s113, 1
        %s367 = smul.addr %s366, 2
        %s368 = scalar_lea.vmem [#allocation7], %s367
        // Predicated region
        $region49: #{tpu_custom_call.1} parent=39 // pred_check
          %p369 = pneg %p126
        $region50: #{tpu_custom_call.1} parent=39 // pred_check_branch
          %371 = sbr.rel (%p369) target = $region52
        $region51: #{tpu_custom_call.1} parent=39 // pred_region
          %372 = dma.done %s365, 32
        $region52: #{tpu_custom_call.1} parent=39 // pred_fallthru
          _
        %s373 = sand.u32 %s171, 1
        %s374 = scalar_lea.sflag [#allocation9], %s373
        %s375 = sand.u32 %s171, 1
        %s376 = smul.addr %s375, 64
        %s377 = scalar_lea.vmem [#allocation8], %s376
        // Predicated region
        $region53: #{tpu_custom_call.1} parent=39 // pred_check
          %p378 = pneg %p184
        $region54: #{tpu_custom_call.1} parent=39 // pred_check_branch
          %380 = sbr.rel (%p378) target = $region56
        $region55: #{tpu_custom_call.1} parent=39 // pred_region
          %381 = dma.done %s374, 1024
        $region56: #{tpu_custom_call.1} parent=39 // pred_fallthru
          _
        %s382 = sand.u32 %s57, 1
        %s383 = scalar_lea.sflag [#allocation3], %s382
        %s384 = sand.u32 %s57, 1
        %s385 = smul.addr %s384, 64
        %s386 = scalar_lea.vmem [#allocation2], %s385
        %p387 = pneg %p70
        %p388 = pneg %p67
        %s389 = sand.u32 %s28, 1
        %s390 = scalar_lea.sflag [#allocation6], %s389
        %s391 = sand.u32 %s85, 1
        %s392 = smul.addr %s391, 256
        %s393 = scalar_lea.vmem [#allocation5], %s392
        %p394 = pneg %p98
        %p395 = pneg %p95
        %s396 = sand.u32 %s28, 1
        %s397 = scalar_lea.sflag [#allocation6], %s396
        %s398 = sand.u32 %s113, 1
        %s399 = smul.addr %s398, 2
        %s400 = scalar_lea.vmem [#allocation7], %s399
        %p401 = pneg %p126
        %p402 = pneg %p123
        %s403 = smul.u32 2, %s35
        %p404 = scmp.lt.s32.totalorder %s33, 1
        %s405 = scalar_select %p404, %s33, 1
        %p406 = scmp.lt.s32.totalorder %s403, 1
        %s407 = scalar_select %p406, %s403, 1
        %s408 = smul.addr %s405, 2
        %s409 = sadd.s32 %s407, %s408
        %s410 = scalar_lea.vmem %s3, %s409
        %p411 = pneg %p154
        %p412 = pneg %p151
        %s413 = sand.u32 %s171, 1
        %s414 = scalar_lea.sflag [#allocation9], %s413
        %s415 = sand.u32 %s171, 1
        %s416 = smul.addr %s415, 64
        %s417 = scalar_lea.vmem [#allocation8], %s416
        %p418 = pneg %p184
        %p419 = pneg %p181
        %p420 = pneg %p214
        %p421 = pneg %p211
        %s422 = sand.u32 %s201, 1
        %s423 = scalar_lea.sflag [#allocation4], %s422
        %s424 = sand.u32 %s201, 1
        %s425 = smul.addr %s424, 128
        %s426 = scalar_lea.vmem [#allocation10], %s425
        %s427 = smul.u32 8, %s34
        %s428 = smul.u32 2, %s35
        %s429 = smul.u32 2, %s35
        %s430 = smul.u32 2, %s35
        %p431 = scmp.lt.s32.totalorder %s33, 1
        %s432 = scalar_select %p431, %s33, 1
        %p433 = scmp.lt.s32.totalorder %s430, 1
        %s434 = scalar_select %p433, %s430, 1
        %s435 = smul.addr %s432, 2
        %s436 = sadd.s32 %s434, %s435
        %s437 = scalar_lea.vmem %s3, %s436
        %s438 = smul.u32 2, %s35
        %s439 = smul.u32 8, %s34
        %s440 = smul.u32 2, %s35
        %s441 = smul.u32 8, %s34
        %s442 = smul.u32 2, %s35
        %v443 = vld [vmem:[%s350] sm:$0xff]
        %v444 = vld [vmem:[%s350 + $0x8] sm:$0xff]
        %v445 = vld [vmem:[%s350 + $0x10] sm:$0xff]
        %v446 = vld [vmem:[%s350 + $0x18] sm:$0xff]
        %v447 = vld [vmem:[%s350 + $0x20] sm:$0xff]
        %v448 = vld [vmem:[%s350 + $0x28] sm:$0xff]
        %v449 = vld [vmem:[%s350 + $0x30] sm:$0xff]
        %v450 = vld [vmem:[%s350 + $0x38] sm:$0xff]
        %v451 = vld [vmem:[%s359] sm:$0xff]
        %v452 = vld [vmem:[%s359 + $0x8] sm:$0xff]
        %v453 = vld [vmem:[%s359 + $0x10] sm:$0xff]
        %v454 = vld [vmem:[%s359 + $0x18] sm:$0xff]
        %v455 = vld [vmem:[%s359 + $0x20] sm:$0xff]
        %v456 = vld [vmem:[%s359 + $0x28] sm:$0xff]
        %v457 = vld [vmem:[%s359 + $0x30] sm:$0xff]
        %v458 = vld [vmem:[%s359 + $0x38] sm:$0xff]
        %v459 = vld [vmem:[%s359 + $0x40] sm:$0xff]
        %v460 = vld [vmem:[%s359 + $0x48] sm:$0xff]
        %v461 = vld [vmem:[%s359 + $0x50] sm:$0xff]
        %v462 = vld [vmem:[%s359 + $0x58] sm:$0xff]
        %v463 = vld [vmem:[%s359 + $0x60] sm:$0xff]
        %v464 = vld [vmem:[%s359 + $0x68] sm:$0xff]
        %v465 = vld [vmem:[%s359 + $0x70] sm:$0xff]
        %v466 = vld [vmem:[%s359 + $0x78] sm:$0xff]
        %v467 = vld [vmem:[%s359 + $0x80] sm:$0xff]
        %v468 = vld [vmem:[%s359 + $0x88] sm:$0xff]
        %v469 = vld [vmem:[%s359 + $0x90] sm:$0xff]
        %v470 = vld [vmem:[%s359 + $0x98] sm:$0xff]
        %v471 = vld [vmem:[%s359 + $0xa0] sm:$0xff]
        %v472 = vld [vmem:[%s359 + $0xa8] sm:$0xff]
        %v473 = vld [vmem:[%s359 + $0xb0] sm:$0xff]
        %v474 = vld [vmem:[%s359 + $0xb8] sm:$0xff]
        %v475 = vld [vmem:[%s359 + $0xc0] sm:$0xff]
        %v476 = vld [vmem:[%s359 + $0xc8] sm:$0xff]
        %v477 = vld [vmem:[%s359 + $0xd0] sm:$0xff]
        %v478 = vld [vmem:[%s359 + $0xd8] sm:$0xff]
        %v479 = vld [vmem:[%s359 + $0xe0] sm:$0xff]
        %v480 = vld [vmem:[%s359 + $0xe8] sm:$0xff]
        %v481 = vld [vmem:[%s359 + $0xf0] sm:$0xff]
        %v482 = vld [vmem:[%s359 + $0xf8] sm:$0xff]
        %v491 = vunpack.c.l.b16 %v443
        %v492 = vunpack.c.h.b16 %v443
        %v493 = vunpack.c.l.b16 %v444
        %v494 = vunpack.c.h.b16 %v444
        %v495 = vunpack.c.l.b16 %v445
        %v496 = vunpack.c.h.b16 %v445
        %v497 = vunpack.c.l.b16 %v446
        %v498 = vunpack.c.h.b16 %v446
        %v499 = vunpack.c.l.b16 %v447
        %v500 = vunpack.c.h.b16 %v447
        %v501 = vunpack.c.l.b16 %v448
        %v502 = vunpack.c.h.b16 %v448
        %v503 = vunpack.c.l.b16 %v449
        %v504 = vunpack.c.h.b16 %v449
        %v505 = vunpack.c.l.b16 %v450
        %v506 = vunpack.c.h.b16 %v450
        %v507 = vpack.c.b16 %v493, %v491
        %v508 = vpack.c.b16 %v494, %v492
        %v509 = vpack.c.b16 %v497, %v495
        %v510 = vpack.c.b16 %v498, %v496
        %v511 = vpack.c.b16 %v501, %v499
        %v512 = vpack.c.b16 %v502, %v500
        %v513 = vpack.c.b16 %v505, %v503
        %v514 = vpack.c.b16 %v506, %v504
        %v555 = vunpack.c.l.b16 %v451
        %v556 = vunpack.c.h.b16 %v451
        %v557 = vunpack.c.l.b16 %v452
        %v558 = vunpack.c.h.b16 %v452
        %v559 = vunpack.c.l.b16 %v453
        %v560 = vunpack.c.h.b16 %v453
        %v561 = vunpack.c.l.b16 %v454
        %v562 = vunpack.c.h.b16 %v454
        %v563 = vunpack.c.l.b16 %v455
        %v564 = vunpack.c.h.b16 %v455
        %v565 = vunpack.c.l.b16 %v456
        %v566 = vunpack.c.h.b16 %v456
        %v567 = vunpack.c.l.b16 %v457
        %v568 = vunpack.c.h.b16 %v457
        %v569 = vunpack.c.l.b16 %v458
        %v570 = vunpack.c.h.b16 %v458
        %v571 = vunpack.c.l.b16 %v459
        %v572 = vunpack.c.h.b16 %v459
        %v573 = vunpack.c.l.b16 %v460
        %v574 = vunpack.c.h.b16 %v460
        %v575 = vunpack.c.l.b16 %v461
        %v576 = vunpack.c.h.b16 %v461
        %v577 = vunpack.c.l.b16 %v462
        %v578 = vunpack.c.h.b16 %v462
        %v579 = vunpack.c.l.b16 %v463
        %v580 = vunpack.c.h.b16 %v463
        %v581 = vunpack.c.l.b16 %v464
        %v582 = vunpack.c.h.b16 %v464
        %v583 = vunpack.c.l.b16 %v465
        %v584 = vunpack.c.h.b16 %v465
        %v585 = vunpack.c.l.b16 %v466
        %v586 = vunpack.c.h.b16 %v466
        %v587 = vunpack.c.l.b16 %v467
        %v588 = vunpack.c.h.b16 %v467
        %v589 = vunpack.c.l.b16 %v468
        %v590 = vunpack.c.h.b16 %v468
        %v591 = vunpack.c.l.b16 %v469
        %v592 = vunpack.c.h.b16 %v469
        %v593 = vunpack.c.l.b16 %v470
        %v594 = vunpack.c.h.b16 %v470
        %v595 = vunpack.c.l.b16 %v471
        %v596 = vunpack.c.h.b16 %v471
        %v597 = vunpack.c.l.b16 %v472
        %v598 = vunpack.c.h.b16 %v472
        %v599 = vunpack.c.l.b16 %v473
        %v600 = vunpack.c.h.b16 %v473
        %v601 = vunpack.c.l.b16 %v474
        %v602 = vunpack.c.h.b16 %v474
        %v603 = vunpack.c.l.b16 %v475
        %v604 = vunpack.c.h.b16 %v475
        %v605 = vunpack.c.l.b16 %v476
        %v606 = vunpack.c.h.b16 %v476
        %v607 = vunpack.c.l.b16 %v477
        %v608 = vunpack.c.h.b16 %v477
        %v609 = vunpack.c.l.b16 %v478
        %v610 = vunpack.c.h.b16 %v478
        %v611 = vunpack.c.l.b16 %v479
        %v612 = vunpack.c.h.b16 %v479
        %v613 = vunpack.c.l.b16 %v480
        %v614 = vunpack.c.h.b16 %v480
        %v615 = vunpack.c.l.b16 %v481
        %v616 = vunpack.c.h.b16 %v481
        %v617 = vunpack.c.l.b16 %v482
        %v618 = vunpack.c.h.b16 %v482
        %v619 = vpack.c.b16 %v557, %v555
        %v620 = vpack.c.b16 %v558, %v556
        %v621 = vpack.c.b16 %v561, %v559
        %v622 = vpack.c.b16 %v562, %v560
        %v623 = vpack.c.b16 %v565, %v563
        %v624 = vpack.c.b16 %v566, %v564
        %v625 = vpack.c.b16 %v569, %v567
        %v626 = vpack.c.b16 %v570, %v568
        %v627 = vpack.c.b16 %v573, %v571
        %v628 = vpack.c.b16 %v574, %v572
        %v629 = vpack.c.b16 %v577, %v575
        %v630 = vpack.c.b16 %v578, %v576
        %v631 = vpack.c.b16 %v581, %v579
        %v632 = vpack.c.b16 %v582, %v580
        %v633 = vpack.c.b16 %v585, %v583
        %v634 = vpack.c.b16 %v586, %v584
        %v635 = vpack.c.b16 %v589, %v587
        %v636 = vpack.c.b16 %v590, %v588
        %v637 = vpack.c.b16 %v593, %v591
        %v638 = vpack.c.b16 %v594, %v592
        %v639 = vpack.c.b16 %v597, %v595
        %v640 = vpack.c.b16 %v598, %v596
        %v641 = vpack.c.b16 %v601, %v599
        %v642 = vpack.c.b16 %v602, %v600
        %v643 = vpack.c.b16 %v605, %v603
        %v644 = vpack.c.b16 %v606, %v604
        %v645 = vpack.c.b16 %v609, %v607
        %v646 = vpack.c.b16 %v610, %v608
        %v647 = vpack.c.b16 %v613, %v611
        %v648 = vpack.c.b16 %v614, %v612
        %v649 = vpack.c.b16 %v617, %v615
        %v650 = vpack.c.b16 %v618, %v616
        %683 = vmatprep.subr.bf16.mxu0 %v634
        %684 = vmatpush1.bf16.msra.mxu0 %v633
        %685 = vmatprep.subr.bf16.mxu0 %v632
        %686 = vmatpush1.bf16.msra.mxu0 %v631
        %687 = vmatprep.subr.bf16.mxu0 %v630
        %688 = vmatpush1.bf16.msra.mxu0 %v629
        %689 = vmatprep.subr.bf16.mxu0 %v628
        %690 = vmatpush1.bf16.msra.mxu0 %v627
        %691 = vmatprep.subr.bf16.mxu0 %v626
        %692 = vmatpush1.bf16.msra.mxu0 %v625
        %693 = vmatprep.subr.bf16.mxu0 %v624
        %694 = vmatpush1.bf16.msra.mxu0 %v623
        %695 = vmatprep.subr.bf16.mxu0 %v622
        %696 = vmatpush1.bf16.msra.mxu0 %v621
        %697 = vmatprep.subr.bf16.mxu0 %v620
        %698 = vmatpush1.bf16.msra.mxu0 %v619
        %699 = vmatprep.subr.bf16.mxu0 %v650
        %700 = vmatpush2.bf16.msra.mxu0 %v649
        %701 = vmatprep.subr.bf16.mxu0 %v648
        %702 = vmatpush2.bf16.msra.mxu0 %v647
        %703 = vmatprep.subr.bf16.mxu0 %v646
        %704 = vmatpush2.bf16.msra.mxu0 %v645
        %705 = vmatprep.subr.bf16.mxu0 %v644
        %706 = vmatpush2.bf16.msra.mxu0 %v643
        %707 = vmatprep.subr.bf16.mxu0 %v642
        %708 = vmatpush2.bf16.msra.mxu0 %v641
        %709 = vmatprep.subr.bf16.mxu0 %v640
        %710 = vmatpush2.bf16.msra.mxu0 %v639
        %711 = vmatprep.subr.bf16.mxu0 %v638
        %712 = vmatpush2.bf16.msra.mxu0 %v637
        %713 = vmatprep.subr.bf16.mxu0 %v636
        %714 = vmatpush2.bf16.msra.mxu0 %v635
        %715 = vmatprep.mubr.bf16.mxu0 %v508
        %716 = vmatmul.mubr.bf16.gmra.mxu0 %v507
        %v717 = vpop.f32.mrf.mxu0
        %v718 = vadd.f32 0.0, %v717
        %v719 = vpop.f32.mrf.mxu0
        %v720 = vadd.f32 0.0, %v719
        %v721 = vpop.f32.mrf.mxu0
        %v722 = vadd.f32 0.0, %v721
        %v723 = vpop.f32.mrf.mxu0
        %v724 = vadd.f32 0.0, %v723
        %725 = vmatprep.mubr.bf16.mxu0 %v510
        %726 = vmatmul.mubr.bf16.gmra.mxu0 %v509
        %v727 = vpop.f32.mrf.mxu0
        %v728 = vadd.f32 0.0, %v727
        %v729 = vpop.f32.mrf.mxu0
        %v730 = vadd.f32 0.0, %v729
        %v731 = vpop.f32.mrf.mxu0
        %v732 = vadd.f32 0.0, %v731
        %v733 = vpop.f32.mrf.mxu0
        %v734 = vadd.f32 0.0, %v733
        %735 = vmatprep.mubr.bf16.mxu0 %v512
        %736 = vmatmul.mubr.bf16.gmra.mxu0 %v511
        %v737 = vpop.f32.mrf.mxu0
        %v738 = vadd.f32 0.0, %v737
        %v739 = vpop.f32.mrf.mxu0
        %v740 = vadd.f32 0.0, %v739
        %v741 = vpop.f32.mrf.mxu0
        %v742 = vadd.f32 0.0, %v741
        %v743 = vpop.f32.mrf.mxu0
        %v744 = vadd.f32 0.0, %v743
        %745 = vmatprep.mubr.bf16.mxu0 %v514
        %746 = vmatmul.mubr.bf16.gmra.mxu0 %v513
        %v747 = vpop.f32.mrf.mxu0
        %v748 = vadd.f32 0.0, %v747
        %v749 = vpop.f32.mrf.mxu0
        %v750 = vadd.f32 0.0, %v749
        %v751 = vpop.f32.mrf.mxu0
        %v752 = vadd.f32 0.0, %v751
        %v753 = vpop.f32.mrf.mxu0
        %v754 = vadd.f32 0.0, %v753
        %755 = vdwg.mxu0
        %v756 = vld [vmem:[%s368] sm:$0x3]
        %v758 = vlaneseq
        %v759 = vshrl.u32 %v758, 7
        %v760 = vsub.s32 0, %v759
        %v761 = vrot.slane %v756, %v760
        %v762 = vlaneseq
        %v763 = vshrl.u32 %v762, 7
        %v764 = vsub.s32 1, %v763
        %v765 = vrot.slane %v756, %v764
        %v768 = vmul.f32 %v718, %v761
        %v769 = vmul.f32 %v720, %v765
        %v770 = vmul.f32 %v722, %v761
        %v771 = vmul.f32 %v724, %v765
        %v772 = vmul.f32 %v728, %v761
        %v773 = vmul.f32 %v730, %v765
        %v774 = vmul.f32 %v732, %v761
        %v775 = vmul.f32 %v734, %v765
        %v776 = vmul.f32 %v738, %v761
        %v777 = vmul.f32 %v740, %v765
        %v778 = vmul.f32 %v742, %v761
        %v779 = vmul.f32 %v744, %v765
        %v780 = vmul.f32 %v748, %v761
        %v781 = vmul.f32 %v750, %v765
        %v782 = vmul.f32 %v752, %v761
        %v783 = vmul.f32 %v754, %v765
        %v784 = vld [vmem:[%s437] sm:$0x3]
        %v786 = vlaneseq
        %v787 = vshrl.u32 %v786, 7
        %v788 = vsub.s32 0, %v787
        %v789 = vrot.slane %v784, %v788
        %v790 = vlaneseq
        %v791 = vshrl.u32 %v790, 7
        %v792 = vsub.s32 1, %v791
        %v793 = vrot.slane %v784, %v792
        %v796 = vadd.f32 %v768, %v789
        %v797 = vadd.f32 %v769, %v793
        %v798 = vadd.f32 %v770, %v789
        %v799 = vadd.f32 %v771, %v793
        %v800 = vadd.f32 %v772, %v789
        %v801 = vadd.f32 %v773, %v793
        %v802 = vadd.f32 %v774, %v789
        %v803 = vadd.f32 %v775, %v793
        %v804 = vadd.f32 %v776, %v789
        %v805 = vadd.f32 %v777, %v793
        %v806 = vadd.f32 %v778, %v789
        %v807 = vadd.f32 %v779, %v793
        %v808 = vadd.f32 %v780, %v789
        %v809 = vadd.f32 %v781, %v793
        %v810 = vadd.f32 %v782, %v789
        %v811 = vadd.f32 %v783, %v793
        %v812 = vld [vmem:[%s377] sm:$0xff]
        %v813 = vld [vmem:[%s377 + $0x8] sm:$0xff]
        %v814 = vld [vmem:[%s377 + $0x10] sm:$0xff]
        %v815 = vld [vmem:[%s377 + $0x18] sm:$0xff]
        %v816 = vld [vmem:[%s377 + $0x20] sm:$0xff]
        %v817 = vld [vmem:[%s377 + $0x28] sm:$0xff]
        %v818 = vld [vmem:[%s377 + $0x30] sm:$0xff]
        %v819 = vld [vmem:[%s377 + $0x38] sm:$0xff]
        %v820 = vunpack.c.l.bf16 %v812
        %v821 = vunpack.c.h.bf16 %v812
        %v822 = vunpack.c.l.bf16 %v813
        %v823 = vunpack.c.h.bf16 %v813
        %v824 = vunpack.c.l.bf16 %v814
        %v825 = vunpack.c.h.bf16 %v814
        %v826 = vunpack.c.l.bf16 %v815
        %v827 = vunpack.c.h.bf16 %v815
        %v828 = vunpack.c.l.bf16 %v816
        %v829 = vunpack.c.h.bf16 %v816
        %v830 = vunpack.c.l.bf16 %v817
        %v831 = vunpack.c.h.bf16 %v817
        %v832 = vunpack.c.l.bf16 %v818
        %v833 = vunpack.c.h.bf16 %v818
        %v834 = vunpack.c.l.bf16 %v819
        %v835 = vunpack.c.h.bf16 %v819
        %v836 = vadd.f32 %v796, %v820
        %v837 = vadd.f32 %v797, %v821
        %v838 = vadd.f32 %v798, %v822
        %v839 = vadd.f32 %v799, %v823
        %v840 = vadd.f32 %v800, %v824
        %v841 = vadd.f32 %v801, %v825
        %v842 = vadd.f32 %v802, %v826
        %v843 = vadd.f32 %v803, %v827
        %v844 = vadd.f32 %v804, %v828
        %v845 = vadd.f32 %v805, %v829
        %v846 = vadd.f32 %v806, %v830
        %v847 = vadd.f32 %v807, %v831
        %v848 = vadd.f32 %v808, %v832
        %v849 = vadd.f32 %v809, %v833
        %v850 = vadd.f32 %v810, %v834
        %v851 = vadd.f32 %v811, %v835
        %v852 = vmax.f32 %v836, 0.0
        %v853 = vmax.f32 %v837, 0.0
        %v854 = vmax.f32 %v838, 0.0
        %v855 = vmax.f32 %v839, 0.0
        %v856 = vmax.f32 %v840, 0.0
        %v857 = vmax.f32 %v841, 0.0
        %v858 = vmax.f32 %v842, 0.0
        %v859 = vmax.f32 %v843, 0.0
        %v860 = vmax.f32 %v844, 0.0
        %v861 = vmax.f32 %v845, 0.0
        %v862 = vmax.f32 %v846, 0.0
        %v863 = vmax.f32 %v847, 0.0
        %v864 = vmax.f32 %v848, 0.0
        %v865 = vmax.f32 %v849, 0.0
        %v866 = vmax.f32 %v850, 0.0
        %v867 = vmax.f32 %v851, 0.0
        %868 = vst [vmem:[%s426] sm:$0xff] %v852
        %869 = vst [vmem:[%s426 + $0x8] sm:$0xff] %v853
        %870 = vst [vmem:[%s426 + $0x10] sm:$0xff] %v854
        %871 = vst [vmem:[%s426 + $0x18] sm:$0xff] %v855
        %872 = vst [vmem:[%s426 + $0x20] sm:$0xff] %v856
        %873 = vst [vmem:[%s426 + $0x28] sm:$0xff] %v857
        %874 = vst [vmem:[%s426 + $0x30] sm:$0xff] %v858
        %875 = vst [vmem:[%s426 + $0x38] sm:$0xff] %v859
        %876 = vst [vmem:[%s426 + $0x40] sm:$0xff] %v860
        %877 = vst [vmem:[%s426 + $0x48] sm:$0xff] %v861
        %878 = vst [vmem:[%s426 + $0x50] sm:$0xff] %v862
        %879 = vst [vmem:[%s426 + $0x58] sm:$0xff] %v863
        %880 = vst [vmem:[%s426 + $0x60] sm:$0xff] %v864
        %881 = vst [vmem:[%s426 + $0x68] sm:$0xff] %v865
        %882 = vst [vmem:[%s426 + $0x70] sm:$0xff] %v866
        %883 = vst [vmem:[%s426 + $0x78] sm:$0xff] %v867
        %s884 = sand.u32 %s201, 1
        %s885 = scalar_lea.sflag [#allocation4], %s884
        %s886 = sand.u32 %s201, 1
        %s887 = smul.addr %s886, 128
        %s888 = scalar_lea.vmem [#allocation10], %s887
        // Predicated region
        $region57: #{tpu_custom_call.1} parent=39 // pred_check
          %p889 = pneg %p211
        $region58: #{tpu_custom_call.1} parent=39 // pred_check_branch
          %891 = sbr.rel (%p889) target = $region60
        $region59: #{tpu_custom_call.1} parent=39 // pred_region
          %s892 = smul.u32 8, %s34
          %s893 = smul.u32 2, %s35
          %s895 = ssub.s32 2048, 2048
          %896 = vsyncadd %s885, %s895
          %s897 = smul.addr %s892, 2
          %s898 = sadd.s32 %s893, %s897
          %s899 = smul.addr %s33, 16
          %s900 = sadd.s32 %s898, %s899
          %s901 = smul.addr %s900, 128
          %s902 = scalar_lea.hbm %s5, %s901
          %s903 = sshll.u32 %s888, 4
          %s904 = int_to_ptr.vmem [resolvable:$true] %s903
          %909 = dma.vmem_to_hbm [thread:$0]  %s904, 2048, %s902, %s885, 256, 256, 16
        $region60: #{tpu_custom_call.1} parent=39 // pred_fallthru
          _
      $region40: #{tpu_custom_call.1} parent=5 // pred_fallthru
        _
      %p910 = scmp.le.s32.totalorder 2, %s23
      // Predicated region
      $region61: #{tpu_custom_call.1} parent=5 // pred_check
        %p911 = pneg %p910
      $region62: #{tpu_custom_call.1} parent=5 // pred_check_branch
        %913 = sbr.rel (%p911) target = $region64
      $region63: #{tpu_custom_call.1} parent=5 // pred_region
        %s914 = ssub.s32 %s23, 2
        // Predicated region
        $region65: #{tpu_custom_call.1} parent=63 // pred_check
          %p915 = pneg %p217
        $region66: #{tpu_custom_call.1} parent=63 // pred_check_branch
          %917 = sbr.rel (%p915) target = $region68
        $region67: #{tpu_custom_call.1} parent=63 // pred_region
          %s918 = sand.u32 %s202, 1
          %s919 = scalar_lea.sflag [#allocation4], %s918
          %s920 = sand.u32 %s202, 1
          %s921 = smul.addr %s920, 128
          %s922 = scalar_lea.vmem [#allocation10], %s921
          %923 = dma.done %s919, 2048
        $region68: #{tpu_custom_call.1} parent=63 // pred_fallthru
          _
      $region64: #{tpu_custom_call.1} parent=5 // pred_fallthru
        _
    $region6: #{tpu_custom_call.1} parent=1 // loop_footer
      %s27 = sadd.s32 1, %s23
    $region7: #{tpu_custom_call.1} parent=1 // loop_footer_branch
      %22 = sbr.rel target = $region3
    $region8: #{tpu_custom_call.1} parent=1 // loop_exit
      _
    %924 = vsyncpa [#allocation3], 1
    %s925 = scalar_lea.sflag [#allocation3], 1
    %926 = vsyncpa %s925, 1
    %927 = vsyncpa [#allocation6], 1
    %s928 = scalar_lea.sflag [#allocation6], 1
    %929 = vsyncpa %s928, 1
    %930 = vsyncpa [#allocation9], 1
    %s931 = scalar_lea.sflag [#allocation9], 1
    %932 = vsyncpa %s931, 1
    %933 = vsyncpa [#allocation4], 1
    %s934 = scalar_lea.sflag [#allocation4], 1
    %935 = vsyncpa %s934, 1

</llo_original>
